<compile_context>
chip_gen: v7x
topology: tpu7x:2x2x1
jax: 0.10.0
libtpu: 0.0.40
codegen_flags: <defaults>
</compile_context>

<pallas_src>
import numpy as np

import jax
import jax.numpy as jnp
from jax.experimental import pallas as pl
from jax.experimental.pallas import tpu as pltpu


def _make_kernel(use_roll: bool):
    """Builds the per-block kernel.

    Block is (TB, H, W); output block is (TB, H-2, W-2).
    Fixed Sobel weights from init_gradconv():
      wx = [[-1,0,1],[-2,0,2],[-1,0,1]],  wy = [[1,2,1],[0,0,0],[-1,-2,-1]]
    Separable form:
      gx(i,j) = [1,2,1] over rows of (x[:, j+2] - x[:, j])
      gy(i,j) = [1,2,1] over cols of (x[i, :]  - x[i+2, :])
    """

    def kernel(x_ref, o_ref):
        x = x_ref[...].astype(jnp.float32)          # (TB, H, W)
        _, H, W = x.shape

        if use_roll:
            # Lane-aligned path: column shifts via XLU rolls.  The wrapped
            # lanes land only in columns >= W-2, which the final crop drops,
            # so the circular shift is harmless.
            x1 = pltpu.roll(x, W - 1, axis=2)       # x[b, i, j+1] at column j
            x2 = pltpu.roll(x, W - 2, axis=2)       # x[b, i, j+2] at column j

            dcol = x2 - x                            # x[., j+2] - x[., j]
            gx = dcol[:, 0:H - 2, :] + 2.0 * dcol[:, 1:H - 1, :] + dcol[:, 2:H, :]

            d0 = x[:, 0:H - 2, :] - x[:, 2:H, :]     # column j
            d1 = x1[:, 0:H - 2, :] - x1[:, 2:H, :]   # column j+1
            d2 = x2[:, 0:H - 2, :] - x2[:, 2:H, :]   # column j+2
            gy = d0 + 2.0 * d1 + d2

            mc = x1[:, 1:H - 1, :]                   # centre pixel x[i+1, j+1]

            num = jnp.abs(gx) + jnp.abs(gy) - 0.012
            grad = num * pl.reciprocal(mc, approx=False) * 10.0 - 6.0
            # sigmoid(z) == 0.5*tanh(0.5*z) + 0.5 : one EUP op, no exp+divide.
            out = 0.5 * jnp.tanh(0.5 * grad) + 0.5
            o_ref[...] = out[:, :, 0:W - 2].astype(o_ref.dtype)
        else:
            # Fallback for small / unaligned widths: slice-based shifts.
            dcol = x[:, :, 2:] - x[:, :, :-2]                    # (TB, H,   W-2)
            gx = dcol[:, 0:H - 2, :] + 2.0 * dcol[:, 1:H - 1, :] + dcol[:, 2:H, :]

            drow = x[:, 0:H - 2, :] - x[:, 2:H, :]               # (TB, H-2, W)
            gy = drow[:, :, 0:W - 2] + 2.0 * drow[:, :, 1:W - 1] + drow[:, :, 2:W]

            mc = x[:, 1:H - 1, 1:W - 1]                          # centre pixels

            num = jnp.abs(gx) + jnp.abs(gy) - 0.012
            grad = num * pl.reciprocal(mc, approx=False) * 10.0 - 6.0
            o_ref[...] = (0.5 * jnp.tanh(0.5 * grad) + 0.5).astype(o_ref.dtype)

    return kernel


def comp1dgrad(x_nchw, *, out_dtype=jnp.float32):
    """x_nchw: (N, 1, H, W) float32/bfloat16 -> (N, 1, H-2, W-2) out_dtype."""
    N, C, H, W = x_nchw.shape
    assert C == 1, "Comp1dgrad conv has in_channels=1"
    assert H >= 3 and W >= 3

    x = x_nchw.reshape(N, H, W)
    if x.dtype not in (jnp.float32, jnp.bfloat16):
        x = x.astype(jnp.float32)

    # ---- per-generation VMEM budget ----------------------------------------
    vmem_cap = 128 * 1024 * 1024
    try:
        vmem_cap = int(getattr(pltpu.get_tpu_info(), "vmem_capacity_bytes",
                               vmem_cap))
    except Exception:
        pass
    if vmem_cap >= 100 * 1024 * 1024:            # v5e / v6e: 128 MiB VMEM
        block_budget = 56 * 1024 * 1024
        vmem_cap_limit = 96 * 1024 * 1024
    else:                                        # v7x (64 MiB / TC) or unknown
        block_budget = 26 * 1024 * 1024
        vmem_cap_limit = 44 * 1024 * 1024

    # Per-image working set: double-buffered input + output blocks plus ~5
    # block-sized f32 temporaries (dcol / gx / drow / gy / centre chain).
    in_img = H * W * x.dtype.itemsize
    f32_img = H * W * 4
    out_img = (H - 2) * (W - 2) * np.dtype(out_dtype).itemsize
    per_img = 2 * in_img + 2 * out_img + 5 * f32_img

    # ---- images per grid step ----------------------------------------------
    tb = max(1, block_budget // per_img)
    tb = min(tb, N)
    if N >= 2:
        # >= 2 grid steps: v7x megacore can split the "parallel" batch axis and
        # the auto-pipeline overlaps DMA with compute on single-TC chips.
        tb = min(tb, pl.cdiv(N, 2))

    # Pad the batch to a multiple of tb (instead of shrinking tb to an exact
    # divisor, which collapses to tb=1 for awkward N).  Pad value 1.0 keeps the
    # centre division finite in the discarded images.
    n_pad = pl.cdiv(N, tb) * tb
    if n_pad != N:
        pad = jnp.ones((n_pad - N, H, W), x.dtype)
        x = jnp.concatenate([x, pad], axis=0)
    grid = (n_pad // tb,)

    vmem_limit = int(min(max(per_img * tb * 5 // 4, 32 * 1024 * 1024),
                         vmem_cap_limit))

    # Lane-aligned frames (real Cityscape sizes) take the roll-based path;
    # tiny / unaligned frames use the slice fallback.
    use_roll = (W % 128 == 0) and (H % 8 == 0)

    out = pl.pallas_call(
        _make_kernel(use_roll),
        out_shape=jax.ShapeDtypeStruct((n_pad, H - 2, W - 2), out_dtype),
        grid=grid,
        in_specs=[pl.BlockSpec((tb, H, W), lambda n: (n, 0, 0))],
        out_specs=pl.BlockSpec((tb, H - 2, W - 2), lambda n: (n, 0, 0)),
        compiler_params=pltpu.CompilerParams(
            dimension_semantics=("parallel",),
            vmem_limit_bytes=vmem_limit,
        ),
    )(x)

    if n_pad != N:
        out = out[:N]
    return out.reshape(N, 1, H - 2, W - 2)


def _reference(x_nchw):
    """Pure-JAX reference (same math via lax.conv) for a sanity check."""
    wx = jnp.array([[-1.0, 0.0, 1.0], [-2.0, 0.0, 2.0], [-1.0, 0.0, 1.0]],
                   jnp.float32).reshape(1, 1, 3, 3)
    wy = jnp.array([[1.0, 2.0, 1.0], [0.0, 0.0, 0.0], [-1.0, -2.0, -1.0]],
                   jnp.float32).reshape(1, 1, 3, 3)
    gx = jnp.abs(jax.lax.conv_general_dilated(
        x_nchw, wx, (1, 1), "VALID",
        dimension_numbers=("NCHW", "OIHW", "NCHW"),
        precision=jax.lax.Precision.HIGHEST))
    gy = jnp.abs(jax.lax.conv_general_dilated(
        x_nchw, wy, (1, 1), "VALID",
        dimension_numbers=("NCHW", "OIHW", "NCHW"),
        precision=jax.lax.Precision.HIGHEST))
    grad = (gx + gy - 0.012) / x_nchw[:, :, 1:-1, 1:-1] * 10.0 - 6.0
    return jax.nn.sigmoid(grad)


if __name__ == "__main__":
    key = jax.random.PRNGKey(0)
    k1, k2 = jax.random.split(key)

    # Case 1: canonical small demo shape (batch=2, 16x16).
    x1 = jax.random.uniform(k1, (2, 1, 16, 16), jnp.float32,
                            minval=0.1, maxval=1.0)
    out1 = comp1dgrad(x1)
    jax.block_until_ready(out1)
    ref1 = _reference(x1)
    assert out1.shape == (2, 1, 14, 14)
    assert jnp.allclose(out1, ref1, atol=1e-5, rtol=1e-5)

    # Case 2: odd batch / non-square frame -> exercises the batch-padding path
    # (tb=2, one padded image of ones, 2 parallel grid steps).
    x2 = jax.random.uniform(k2, (3, 1, 24, 40), jnp.float32,
                            minval=0.1, maxval=1.0)
    out2 = comp1dgrad(x2)
    jax.block_until_ready(out2)
    ref2 = _reference(x2)
    assert out2.shape == (3, 1, 22, 38)
    assert jnp.allclose(out2, ref2, atol=1e-5, rtol=1e-5)

    print("KERNEL_OK")
</pallas_src>

<mosaic_0001>
module attributes {stable_mosaic.version = 11 : i64} {
  func.func @kernel(%arg0: i32, %arg1: memref<1x16x16xf32, #tpu.memory_space<vmem>>, %arg2: memref<1x14x14xf32, #tpu.memory_space<vmem>>) attributes {dimension_semantics = [#tpu.dimension_semantics<parallel>], iteration_bounds = array<i64: 2>, scalar_prefetch = 0 : i64, scratch_operands = 0 : i64, tpu.core_type = #tpu.core_type<tc>, window_params = [{transform_indices = @transform_0, window_bounds = array<i64: 1, 16, 16>}, {transform_indices = @transform_1, window_bounds = array<i64: 1, 14, 14>}]} {
    %c0 = arith.constant 0 : index
    %c0_0 = arith.constant 0 : index
    %c0_1 = arith.constant 0 : index
    %0 = vector.load %arg1[%c0, %c0_0, %c0_1] : memref<1x16x16xf32, #tpu.memory_space<vmem>>, vector<1x16x16xf32>
    %1 = vector.extract_strided_slice %0 {offsets = [0, 0, 2], sizes = [1, 16, 14], strides = [1, 1, 1]} : vector<1x16x16xf32> to vector<1x16x14xf32>
    %2 = vector.extract_strided_slice %0 {offsets = [0, 0, 0], sizes = [1, 16, 14], strides = [1, 1, 1]} : vector<1x16x16xf32> to vector<1x16x14xf32>
    %3 = arith.subf %1, %2 : vector<1x16x14xf32>
    %4 = vector.extract_strided_slice %3 {offsets = [0, 0, 0], sizes = [1, 14, 14], strides = [1, 1, 1]} : vector<1x16x14xf32> to vector<1x14x14xf32>
    %5 = vector.extract_strided_slice %3 {offsets = [0, 1, 0], sizes = [1, 14, 14], strides = [1, 1, 1]} : vector<1x16x14xf32> to vector<1x14x14xf32>
    %cst = arith.constant 2.000000e+00 : f32
    %6 = vector.broadcast %cst : f32 to vector<1x14x14xf32>
    %7 = arith.mulf %6, %5 : vector<1x14x14xf32>
    %8 = arith.addf %4, %7 : vector<1x14x14xf32>
    %9 = vector.extract_strided_slice %3 {offsets = [0, 2, 0], sizes = [1, 14, 14], strides = [1, 1, 1]} : vector<1x16x14xf32> to vector<1x14x14xf32>
    %10 = arith.addf %8, %9 : vector<1x14x14xf32>
    %11 = vector.extract_strided_slice %0 {offsets = [0, 0, 0], sizes = [1, 14, 16], strides = [1, 1, 1]} : vector<1x16x16xf32> to vector<1x14x16xf32>
    %12 = vector.extract_strided_slice %0 {offsets = [0, 2, 0], sizes = [1, 14, 16], strides = [1, 1, 1]} : vector<1x16x16xf32> to vector<1x14x16xf32>
    %13 = arith.subf %11, %12 : vector<1x14x16xf32>
    %14 = vector.extract_strided_slice %13 {offsets = [0, 0, 0], sizes = [1, 14, 14], strides = [1, 1, 1]} : vector<1x14x16xf32> to vector<1x14x14xf32>
    %15 = vector.extract_strided_slice %13 {offsets = [0, 0, 1], sizes = [1, 14, 14], strides = [1, 1, 1]} : vector<1x14x16xf32> to vector<1x14x14xf32>
    %cst_2 = arith.constant 2.000000e+00 : f32
    %16 = vector.broadcast %cst_2 : f32 to vector<1x14x14xf32>
    %17 = arith.mulf %16, %15 : vector<1x14x14xf32>
    %18 = arith.addf %14, %17 : vector<1x14x14xf32>
    %19 = vector.extract_strided_slice %13 {offsets = [0, 0, 2], sizes = [1, 14, 14], strides = [1, 1, 1]} : vector<1x14x16xf32> to vector<1x14x14xf32>
    %20 = arith.addf %18, %19 : vector<1x14x14xf32>
    %21 = vector.extract_strided_slice %0 {offsets = [0, 1, 1], sizes = [1, 14, 14], strides = [1, 1, 1]} : vector<1x16x16xf32> to vector<1x14x14xf32>
    %22 = math.absf %10 : vector<1x14x14xf32>
    %23 = math.absf %20 : vector<1x14x14xf32>
    %24 = arith.addf %22, %23 : vector<1x14x14xf32>
    %cst_3 = arith.constant 1.200000e-02 : f32
    %25 = vector.broadcast %cst_3 : f32 to vector<1x14x14xf32>
    %26 = arith.subf %24, %25 : vector<1x14x14xf32>
    %27 = tpu.reciprocal %21 : vector<1x14x14xf32> -> vector<1x14x14xf32>
    %28 = arith.mulf %26, %27 : vector<1x14x14xf32>
    %cst_4 = arith.constant 1.000000e+01 : f32
    %29 = vector.broadcast %cst_4 : f32 to vector<1x14x14xf32>
    %30 = arith.mulf %28, %29 : vector<1x14x14xf32>
    %cst_5 = arith.constant 6.000000e+00 : f32
    %31 = vector.broadcast %cst_5 : f32 to vector<1x14x14xf32>
    %32 = arith.subf %30, %31 : vector<1x14x14xf32>
    %cst_6 = arith.constant 5.000000e-01 : f32
    %33 = vector.broadcast %cst_6 : f32 to vector<1x14x14xf32>
    %34 = arith.mulf %33, %32 : vector<1x14x14xf32>
    %35 = math.tanh %34 : vector<1x14x14xf32>
    %cst_7 = arith.constant 5.000000e-01 : f32
    %36 = vector.broadcast %cst_7 : f32 to vector<1x14x14xf32>
    %37 = arith.mulf %36, %35 : vector<1x14x14xf32>
    %cst_8 = arith.constant 5.000000e-01 : f32
    %38 = vector.broadcast %cst_8 : f32 to vector<1x14x14xf32>
    %39 = arith.addf %37, %38 : vector<1x14x14xf32>
    %c0_9 = arith.constant 0 : index
    %c0_10 = arith.constant 0 : index
    %c0_11 = arith.constant 0 : index
    %40 = vector.load %arg2[%c0_9, %c0_10, %c0_11] : memref<1x14x14xf32, #tpu.memory_space<vmem>>, vector<1x14x14xf32>
    tpu.vector_store %arg2[%c0_9, %c0_10, %c0_11], %39 {strides = array<i32>} : memref<1x14x14xf32, #tpu.memory_space<vmem>>, vector<1x14x14xf32>,
    return
  }
  func.func @transform_0(%arg0: i32) -> (i32, i32, i32) {
    %c0_i32 = arith.constant 0 : i32
    %c0_i32_0 = arith.constant 0 : i32
    %c0_i32_1 = arith.constant 0 : i32
    return %arg0, %c0_i32, %c0_i32_0 : i32, i32, i32
  }
  func.func @transform_1(%arg0: i32) -> (i32, i32, i32) {
    %c0_i32 = arith.constant 0 : i32
    %c0_i32_0 = arith.constant 0 : i32
    %c0_i32_1 = arith.constant 0 : i32
    return %arg0, %c0_i32, %c0_i32_0 : i32, i32, i32
  }
}

</mosaic_0001>

<llo_original>
// kernel: tpu_custom_call.1
$region0: #{tpu_custom_call.1}
  #allocation0 [shape = 'u32[]', space=smem, size = 0x4, offset = 0x4, fixed_abs, tag = 'smem constant byte address 0x4 - core index']
  #allocation1 [shape = 'u32[144,128]{1,0:T(1,128)}', space=vmem, size = 0x12000, scoped, tag = 'internal scratch']
  %s0 = inlined_call_operand.hbm [shape: f32[2,16,16], index: 0, kind: input, shape index: {}]
  %s1 = inlined_call_operand.vmem [shape: f32[2,14,14], index: 1, kind: output, shape index: {}]
  %s2 = sld [smem:[#allocation0]]
  $region41: #{tpu_custom_call.1} parent=0
    _
  %s4 = ssub.s32 1, %s2
  %s5 = scalar_select 0, %s4, %s2
  $region1: #{tpu_custom_call.1} parent=0
    #allocation2 [shape = 'u8[16384]{0}', space=vmem, size = 0x4000, scoped, tag = 'input window, operand 0']
    #allocation3 [shape = 's32[2]{0}', space=sflag, size = 0x8, scoped, tag = 'scoped memory for tpu_custom_call.1']
    %6 = vsyncpa [#allocation3], 0
    %s7 = scalar_lea.sflag [#allocation3], 1
    %8 = vsyncpa %s7, 0
    loop: start=0, step=1, limit=4
    $region2: #{tpu_custom_call.1} parent=1 // loop_pre_header
      _
    $region3: #{tpu_custom_call.1} parent=1 // loop_header
      %s10 = sphi 0, %s14
      %p11 = scmp.ge.s32.totalorder %s10, 4
      %s20 = sphi 0, %s22
      %s23 = sphi 0, %s20
      %s24 = sphi 0, %s23
      %s40 = sphi 0, %s24
      %s46 = sphi 0, %s48
      %s49 = sphi 0, %s46
      %s50 = sphi 0, %s49
      %s66 = sphi 0, %s50
    $region4: #{tpu_custom_call.1} parent=1 // loop_header_branch
      %13 = sbr.rel (%p11) target = $region8
    $region5: #{tpu_custom_call.1} parent=1 // loop_body
      %s15 = ssub.s32 %s10, 1
      %s16 = ssub.s32 %s10, 2
      %s17 = sadd.s32 %s10, 1
      %s18 = ssub.s32 %s10, %s17
      %p19 = scmp.eq.s32.totalorder %s18, 0
      %s21 = sadd.s32 %s20, 1
      %s22 = scalar_select %p19, %s20, %s21
      %p25 = pneg %p19
      %p26 = scmp.eq.s32.totalorder %s10, 1
      %p27 = por %p25, %p26
      %p28 = scmp.ne.s32.totalorder %s20, %s23
      %p29 = scmp.eq.s32.totalorder %s10, 0
      %p30 = por %p28, %p29
      %p31 = scmp.ne.s32.totalorder %s20, %s23
      %p32 = scmp.eq.s32.totalorder %s15, 1
      %p33 = por %p31, %p32
      %p34 = scmp.ne.s32.totalorder %s23, %s24
      %p35 = scmp.eq.s32.totalorder %s15, 0
      %p36 = por %p34, %p35
      %p37 = scmp.ne.s32.totalorder %s23, %s24
      %p38 = scmp.eq.s32.totalorder %s16, 1
      %p39 = por %p37, %p38
      %p41 = scmp.ne.s32.totalorder %s24, %s40
      %p42 = scmp.eq.s32.totalorder %s16, 0
      %p43 = por %p41, %p42
      %s44 = ssub.s32 %s10, %s17
      %p45 = scmp.eq.s32.totalorder %s44, 0
      %s47 = sadd.s32 %s46, 1
      %s48 = scalar_select %p45, %s46, %s47
      %p51 = pneg %p45
      %p52 = scmp.eq.s32.totalorder %s10, 1
      %p53 = por %p51, %p52
      %p54 = scmp.ne.s32.totalorder %s46, %s49
      %p55 = scmp.eq.s32.totalorder %s10, 0
      %p56 = por %p54, %p55
      %p57 = scmp.ne.s32.totalorder %s46, %s49
      %p58 = scmp.eq.s32.totalorder %s15, 1
      %p59 = por %p57, %p58
      %p60 = scmp.ne.s32.totalorder %s49, %s50
      %p61 = scmp.eq.s32.totalorder %s15, 0
      %p62 = por %p60, %p61
      %p63 = scmp.ne.s32.totalorder %s49, %s50
      %p64 = scmp.eq.s32.totalorder %s16, 1
      %p65 = por %p63, %p64
      %p67 = scmp.ne.s32.totalorder %s50, %s66
      %p68 = scmp.eq.s32.totalorder %s16, 0
      %p69 = por %p67, %p68
      %p70 = scmp.le.s32.totalorder 1, %s10
      %p71 = scmp.lt.s32.totalorder %s10, 3
      %p72 = pnand %p70, %p71
      %p73 = pneg %p72
      // Predicated region
      $region9: #{tpu_custom_call.1} parent=5 // pred_check
        _
      $region10: #{tpu_custom_call.1} parent=5 // pred_check_branch
        %75 = sbr.rel (%p72) target = $region12
      $region11: #{tpu_custom_call.1} parent=5 // pred_region
        %s76 = ssub.s32 %s10, 1
      $region12: #{tpu_custom_call.1} parent=5 // pred_fallthru
        _
      %p77 = scmp.lt.s32.totalorder %s10, 2
      // Predicated region
      $region13: #{tpu_custom_call.1} parent=5 // pred_check
        %p78 = pneg %p77
      $region14: #{tpu_custom_call.1} parent=5 // pred_check_branch
        %80 = sbr.rel (%p78) target = $region16
      $region15: #{tpu_custom_call.1} parent=5 // pred_region
        // Predicated region
        $region17: #{tpu_custom_call.1} parent=15 // pred_check
          %p81 = pneg %p30
        $region18: #{tpu_custom_call.1} parent=15 // pred_check_branch
          %83 = sbr.rel (%p81) target = $region20
        $region19: #{tpu_custom_call.1} parent=15 // pred_region
          %s84 = sand.u32 %s20, 1
          %s85 = scalar_lea.sflag [#allocation3], %s84
          %s86 = sand.u32 %s20, 1
          %s87 = smul.addr %s86, 16
          %s88 = scalar_lea.vmem [#allocation2], %s87
          %s90 = ssub.s32 256, 256
          %91 = vsyncadd %s85, %s90
          %s92 = smul.addr %s10, 2
          %s93 = smul.addr %s92, 128
          %s94 = scalar_lea.hbm %s0, %s93
          %s95 = sshll.u32 %s88, 4
          %s96 = int_to_ptr.vmem [resolvable:$true] %s95
          %101 = dma.hbm_to_vmem [thread:$0]  %s94, 256, %s96, %s85, 128, 128, 8
        $region20: #{tpu_custom_call.1} parent=15 // pred_fallthru
          _
      $region16: #{tpu_custom_call.1} parent=5 // pred_fallthru
        _
      %p102 = scmp.le.s32.totalorder 1, %s10
      %p103 = scmp.lt.s32.totalorder %s10, 3
      %p104 = pnand %p102, %p103
      %p105 = pneg %p104
      // Predicated region
      $region21: #{tpu_custom_call.1} parent=5 // pred_check
        _
      $region22: #{tpu_custom_call.1} parent=5 // pred_check_branch
        %107 = sbr.rel (%p104) target = $region24
      $region23: #{tpu_custom_call.1} parent=5 // pred_region
        %s108 = ssub.s32 %s10, 1
        %s109 = sand.u32 %s23, 1
        %s110 = scalar_lea.sflag [#allocation3], %s109
        %s111 = sand.u32 %s23, 1
        %s112 = smul.addr %s111, 16
        %s113 = scalar_lea.vmem [#allocation2], %s112
        // Predicated region
        $region25: #{tpu_custom_call.1} parent=23 // pred_check
          %p114 = pneg %p36
        $region26: #{tpu_custom_call.1} parent=23 // pred_check_branch
          %116 = sbr.rel (%p114) target = $region28
        $region27: #{tpu_custom_call.1} parent=23 // pred_region
          %117 = dma.done %s110, 256
        $region28: #{tpu_custom_call.1} parent=23 // pred_fallthru
          _
        %s118 = sand.u32 %s23, 1
        %s119 = scalar_lea.sflag [#allocation3], %s118
        %s120 = sand.u32 %s23, 1
        %s121 = smul.addr %s120, 16
        %s122 = scalar_lea.vmem [#allocation2], %s121
        %p123 = pneg %p36
        %p124 = pneg %p33
        %p125 = pneg %p62
        %p126 = pneg %p59
        %p127 = scmp.lt.s32.totalorder %s15, 1
        %s128 = scalar_select %p127, %s15, 1
        %s129 = smul.addr %s128, 2
        %s130 = smul.addr %s129, 8
        %s131 = scalar_lea.vmem %s1, %s130
        %p132 = scmp.lt.s32.totalorder %s15, 1
        %s133 = scalar_select %p132, %s15, 1
        %s134 = smul.addr %s133, 2
        %s135 = smul.addr %s134, 8
        %s136 = scalar_lea.vmem %s1, %s135
        %v137 = vld [vmem:[%s113] sm:$0xff]
        %v138 = vld [vmem:[%s113 + $0x8] sm:$0xff]
        %141 = vrot.lane.b32.xlu0 %v137, 2
        %v142 = vpop.permute.xlu0 %141
        %143 = vrot.lane.b32.xlu0 %v138, 2
        %v144 = vpop.permute.xlu0 %143
        %v147 = vsub.f32 %v137, %v142
        %v148 = vsub.f32 %v138, %v144
        %v149 = vmul.f32 %v147, 2.0
        %v150 = vmul.f32 %v148, 2.0
        %vm153 = vcmask 1046528
        %v154 = vrot.slane %v149, 1
        %v155 = vrot.slane %v150, 1
        %v156 = vsel %vm153, %v154, %v155
        %v159 = vadd.f32 %v147, %v156
        %v160 = vadd.f32 %v148, %v155
        %vm163 = vcmask 1045504
        %v164 = vrot.slane %v147, 2
        %v165 = vrot.slane %v148, 2
        %v166 = vsel %vm163, %v164, %v165
        %v169 = vadd.f32 %v159, %v166
        %v170 = vadd.f32 %v160, %v165
        %v171 = vrot.slane %v137, 2
        %v172 = vrot.slane %v138, 2
        %v173 = vsel %vm163, %v171, %v172
        %v176 = vsub.f32 %v137, %v173
        %v177 = vsub.f32 %v138, %v172
        %v178 = vmul.f32 %v176, 2.0
        %v179 = vmul.f32 %v177, 2.0
        %182 = vrot.lane.b32.xlu0 %v178, 127
        %v183 = vpop.permute.xlu0 %182
        %184 = vrot.lane.b32.xlu0 %v179, 127
        %v185 = vpop.permute.xlu0 %184
        %v188 = vadd.f32 %v176, %v183
        %v189 = vadd.f32 %v177, %v185
        %192 = vrot.lane.b32.xlu0 %v176, 126
        %v193 = vpop.permute.xlu0 %192
        %194 = vrot.lane.b32.xlu0 %v177, 126
        %v195 = vpop.permute.xlu0 %194
        %v198 = vadd.f32 %v188, %v193
        %v199 = vadd.f32 %v189, %v195
        %v200 = vand.u32 2147483647, %v169
        %v201 = vand.u32 2147483647, %v170
        %v202 = vand.u32 2147483647, %v198
        %v203 = vand.u32 2147483647, %v199
        %206 = vrot.lane.b32.xlu0 %v202, 2
        %v207 = vpop.permute.xlu0 %206
        %208 = vrot.lane.b32.xlu0 %v203, 2
        %v209 = vpop.permute.xlu0 %208
        %v212 = vadd.f32 %v200, %v207
        %v213 = vadd.f32 %v201, %v209
        %v214 = vsub.f32 %v212, 0.012
        %v215 = vsub.f32 %v213, 0.012
        %v216 = vrcp.pop %v137
        %v217 = vrcp.pop %v138
        %v220 = vrot.slane %v216, 1
        %v221 = vrot.slane %v217, 1
        %v222 = vsel %vm153, %v220, %v221
        %223 = vrot.lane.b32.xlu0 %v222, 1
        %v224 = vpop.permute.xlu0 %223
        %225 = vrot.lane.b32.xlu0 %v221, 1
        %v226 = vpop.permute.xlu0 %225
        %v229 = vmul.f32 %v214, %v224
        %v230 = vmul.f32 %v215, %v226
        %v231 = vmul.f32 %v229, 10.0
        %v232 = vmul.f32 %v230, 10.0
        %v233 = vsub.f32 %v231, 6.0
        %v234 = vsub.f32 %v232, 6.0
        %v235 = vmul.f32 %v233, 0.5
        %v236 = vmul.f32 %v234, 0.5
        %v237 = vtanh.pop %v235
        %v238 = vtanh.pop %v236
        %v239 = vmul.f32 %v237, 0.5
        %v240 = vmul.f32 %v238, 0.5
        %v241 = vadd.f32 %v239, 0.5
        %v242 = vadd.f32 %v240, 0.5
        %245 = vrot.lane.b32.xlu0 %v241, 126
        %v246 = vpop.permute.xlu0 %245
        %247 = vrot.lane.b32.xlu0 %v242, 126
        %v248 = vpop.permute.xlu0 %247
        %vm251 = vcmask 113664
        %252 = vst.msk [vmem:[%s136] sm:$0xff] %vm251, %v246
        %vm253 = vcmask 111616
        %254 = vst.msk [vmem:[%s136 + $0x8] sm:$0x3f] %vm253, %v248
        %p255 = scmp.lt.s32.totalorder %s15, 1
        %s256 = scalar_select %p255, %s15, 1
        %s257 = smul.addr %s256, 2
        %s258 = smul.addr %s257, 8
        %s259 = scalar_lea.vmem %s1, %s258
        // Predicated region
        $region29: #{tpu_custom_call.1} parent=23 // pred_check
          %p260 = pneg %p59
        $region30: #{tpu_custom_call.1} parent=23 // pred_check_branch
          %262 = sbr.rel (%p260) target = $region32
        $region31: #{tpu_custom_call.1} parent=23 // pred_region
          _
        $region32: #{tpu_custom_call.1} parent=23 // pred_fallthru
          _
      $region24: #{tpu_custom_call.1} parent=5 // pred_fallthru
        _
      %p263 = scmp.le.s32.totalorder 2, %s10
      // Predicated region
      $region33: #{tpu_custom_call.1} parent=5 // pred_check
        %p264 = pneg %p263
      $region34: #{tpu_custom_call.1} parent=5 // pred_check_branch
        %266 = sbr.rel (%p264) target = $region36
      $region35: #{tpu_custom_call.1} parent=5 // pred_region
        %s267 = ssub.s32 %s10, 2
        // Predicated region
        $region37: #{tpu_custom_call.1} parent=35 // pred_check
          %p268 = pneg %p65
        $region38: #{tpu_custom_call.1} parent=35 // pred_check_branch
          %270 = sbr.rel (%p268) target = $region40
        $region39: #{tpu_custom_call.1} parent=35 // pred_region
          %p271 = scmp.lt.s32.totalorder %s16, 1
          %s272 = scalar_select %p271, %s16, 1
          %s273 = smul.addr %s272, 2
          %s274 = smul.addr %s273, 8
          %s275 = scalar_lea.vmem %s1, %s274
        $region40: #{tpu_custom_call.1} parent=35 // pred_fallthru
          _
      $region36: #{tpu_custom_call.1} parent=5 // pred_fallthru
        _
    $region6: #{tpu_custom_call.1} parent=1 // loop_footer
      %s14 = sadd.s32 1, %s10
    $region7: #{tpu_custom_call.1} parent=1 // loop_footer_branch
      %9 = sbr.rel target = $region3
    $region8: #{tpu_custom_call.1} parent=1 // loop_exit
      _
    %276 = vsyncpa [#allocation3], 1
    %s277 = scalar_lea.sflag [#allocation3], 1
    %278 = vsyncpa %s277, 1

</llo_original>
